<compile_context>
chip_gen: v7x
topology: tpu7x:2x2x1
jax: 0.10.0
libtpu: 0.0.40
codegen_flags: <defaults>
</compile_context>

<pallas_src>
import functools

import jax
import jax.numpy as jnp
from jax.experimental import pallas as pl
from jax.experimental.pallas import tpu as pltpu


def _round_up(x, m):
    return ((x + m - 1) // m) * m


def actor_critic_kernel(x_ref, w_ref, b_ref, out_ref, *,
                        n_inputs, d_in, hidden, n_actions):
    """One batch tile: fused feature_map + combine + heads + log-softmax."""
    H = hidden
    A = n_actions
    tb = x_ref.shape[1]            # batch tile (multiple of 8)

    # ---- unpack packed parameters (static ref-window loads) -----------------
    r_wc = d_in                     # wc row-slices start
    r_hd = d_in + n_inputs * H      # fused [wv | wp] rows start
    wf = w_ref[0:d_in, 0:H]                          # (D_in, H)
    whd = w_ref[r_hd:r_hd + H, 0:1 + A]              # (H, 1+A)  = [wv | wp]
    bf = b_ref[0:1, 0:H]                             # (1, H)
    bc = b_ref[1:2, 0:H]                             # (1, H)
    bhd = b_ref[2:3, 0:1 + A]                        # (1, 1+A)  = [bv | bp]

    # ---- feature_map fused over all inputs: ONE matmul ----------------------
    # Stack per-input (TB, D_in) tiles along sublanes (axis 0).  This is tile
    # stacking (TB % 8 == 0), not the removed lane-dim concat.
    x_all = jnp.concatenate([x_ref[i] for i in range(n_inputs)], axis=0)  # (n*TB, D_in)
    h_all = jnp.dot(x_all, wf, preferred_element_type=jnp.float32) + bf
    h_all = jnp.maximum(h_all, 0.0)                                       # (n*TB, H)

    # ---- combine_feature_map without a lane concat ---------------------------
    #   cat([h_0 | h_1 | h_2], -1) @ wc  ==  sum_i  h_i @ wc[i*H:(i+1)*H, :]
    feat_pre = jnp.zeros((tb, H), jnp.float32)
    for i in range(n_inputs):                       # static unroll, n_inputs small
        h_i = h_all[i * tb:(i + 1) * tb, :]                         # (TB, H)
        wc_i = w_ref[r_wc + i * H:r_wc + (i + 1) * H, 0:H]          # (H, H)
        feat_pre = feat_pre + jnp.dot(h_i, wc_i,
                                      preferred_element_type=jnp.float32)
    features = jnp.maximum(feat_pre + bc, 0.0)                      # (TB, H)

    # ---- fused value + policy heads: ONE matmul ------------------------------
    heads = jnp.dot(features, whd, preferred_element_type=jnp.float32) + bhd
    value = heads[:, 0:1]                                           # (TB, 1)
    logits = heads[:, 1:1 + A]                                      # (TB, A)

    # Categorical(logits=...) normalization: stable log-softmax.
    m = jnp.max(logits, axis=-1, keepdims=True)
    z = logits - m
    lse = jnp.log(jnp.sum(jnp.exp(z), axis=-1, keepdims=True))
    logprobs = z - lse

    # Single packed output slab: [ value | logits | logprobs ]  -> one store/DMA.
    out_ref[...] = jnp.concatenate([value, logits, logprobs], axis=-1)


def pack_params(params):
    """Pack all weights into one (R, W) slab and all biases into one (3, W) slab."""
    wf, bf = params["wf"], params["bf"]
    wc, bc = params["wc"], params["bc"]
    wv, bv = params["wv"], params["bv"]
    wp, bp = params["wp"], params["bp"]
    H = wf.shape[1]
    A = wp.shape[1]
    W = max(H, 1 + A)

    def pad_cols(a):
        return jnp.pad(a, ((0, 0), (0, W - a.shape[1])))

    whd = jnp.concatenate([wv, wp], axis=1)                 # (H, 1+A)
    bhd = jnp.concatenate([bv, bp], axis=1)                 # (1, 1+A)
    wpack = jnp.concatenate([pad_cols(wf), pad_cols(wc), pad_cols(whd)],
                            axis=0).astype(jnp.float32)     # (D_in + n*H + H, W)
    bpack = jnp.concatenate([pad_cols(bf), pad_cols(bc), pad_cols(bhd)],
                            axis=0).astype(jnp.float32)     # (3, W)
    return wpack, bpack


def actor_critic_forward(x, params, *, block_b=None):
    """x: (num_inputs, B, D_in) float32. Returns (logits, logprobs, value)."""
    n_in, B, d_in = x.shape
    H = params["wf"].shape[1]
    A = params["wp"].shape[1]
    wpack, bpack = pack_params(params)

    # Batch tile: multiple of 8 sublanes.  Keep tiles modest so double-buffered
    # inputs stay well under v7x's 64 MiB VMEM while still amortizing per-step
    # overhead; the 'parallel' grid axis lets v7x's two TensorCores split B.
    if block_b is None:
        block_b = 512
    tb = max(8, _round_up(min(block_b, _round_up(B, 8)), 8))
    Bp = _round_up(B, tb)
    if Bp != B:
        x = jnp.pad(x, ((0, 0), (0, Bp - B), (0, 0)))

    kernel = functools.partial(actor_critic_kernel, n_inputs=n_in, d_in=d_in,
                               hidden=H, n_actions=A)
    out = pl.pallas_call(
        kernel,
        out_shape=jax.ShapeDtypeStruct((Bp, 1 + 2 * A), jnp.float32),
        grid_spec=pltpu.PrefetchScalarGridSpec(
            num_scalar_prefetch=0,
            grid=(Bp // tb,),
            in_specs=[
                pl.BlockSpec((n_in, tb, d_in), lambda i: (0, i, 0)),
                pl.BlockSpec(wpack.shape, lambda i: (0, 0)),
                pl.BlockSpec(bpack.shape, lambda i: (0, 0)),
            ],
            out_specs=pl.BlockSpec((tb, 1 + 2 * A), lambda i: (i, 0)),
        ),
        compiler_params=pltpu.CompilerParams(
            dimension_semantics=("parallel",)),
    )(x.astype(jnp.float32), wpack, bpack)

    out = out[:B]
    value = out[:, 0]                      # torch .squeeze() -> (B,)
    logits = out[:, 1:1 + A]
    logprobs = out[:, 1 + A:1 + 2 * A]
    return logits, logprobs, value


def init_params(key, num_inputs, d_in, hidden, n_actions):
    ks = jax.random.split(key, 8)
    scale = 0.1
    return {
        # feature_map: shared Linear(D_in -> H) + ReLU
        "wf": scale * jax.random.normal(ks[0], (d_in, hidden), jnp.float32),
        "bf": scale * jax.random.normal(ks[1], (1, hidden), jnp.float32),
        # combine_feature_map: Linear(num_inputs*H -> H) + ReLU
        "wc": scale * jax.random.normal(ks[2], (num_inputs * hidden, hidden), jnp.float32),
        "bc": scale * jax.random.normal(ks[3], (1, hidden), jnp.float32),
        # value_map: Linear(H -> 1)
        "wv": scale * jax.random.normal(ks[4], (hidden, 1), jnp.float32),
        "bv": scale * jax.random.normal(ks[5], (1, 1), jnp.float32),
        # policy_logit_map: Linear(H -> A)
        "wp": scale * jax.random.normal(ks[6], (hidden, n_actions), jnp.float32),
        "bp": scale * jax.random.normal(ks[7], (1, n_actions), jnp.float32),
    }


def reference_forward(x, p):
    """Pure-JAX reference (mirrors the PyTorch forward)."""
    feats = [jnp.maximum(x[i] @ p["wf"] + p["bf"], 0.0) for i in range(x.shape[0])]
    combined = jnp.concatenate(feats, axis=-1)
    features = jnp.maximum(combined @ p["wc"] + p["bc"], 0.0)
    value = (features @ p["wv"] + p["bv"]).squeeze(-1)
    logits = features @ p["wp"] + p["bp"]
    logprobs = jax.nn.log_softmax(logits, axis=-1)
    return logits, logprobs, value


if __name__ == "__main__":
    # env: has_goal=True, has_obstacle=True -> num_inputs = 3; action_space.n = 4
    NUM_INPUTS = 3
    BATCH = 8
    D_IN = 16
    HIDDEN = 32
    N_ACTIONS = 4

    key = jax.random.PRNGKey(0)
    kx, kp = jax.random.split(key)
    x = jax.random.normal(kx, (NUM_INPUTS, BATCH, D_IN), jnp.float32)
    params = init_params(kp, NUM_INPUTS, D_IN, HIDDEN, N_ACTIONS)

    logits, logprobs, value = jax.block_until_ready(actor_critic_forward(x, params))

    # correctness check against the pure-JAX reference
    r_logits, r_logprobs, r_value = reference_forward(x, params)
    assert jnp.allclose(logits, r_logits, atol=1e-5, rtol=1e-5)
    assert jnp.allclose(logprobs, r_logprobs, atol=1e-5, rtol=1e-5)
    assert jnp.allclose(value, r_value, atol=1e-5, rtol=1e-5)

    print("KERNEL_OK")
</pallas_src>

<mosaic_0001>
module attributes {stable_mosaic.version = 11 : i64} {
  func.func @actor_critic_kernel(%arg0: i32, %arg1: memref<3x8x16xf32, #tpu.memory_space<vmem>>, %arg2: memref<144x32xf32, #tpu.memory_space<vmem>>, %arg3: memref<3x32xf32, #tpu.memory_space<vmem>>, %arg4: memref<8x9xf32, #tpu.memory_space<vmem>>) attributes {dimension_semantics = [#tpu.dimension_semantics<parallel>], iteration_bounds = array<i64: 1>, scalar_prefetch = 0 : i64, scratch_operands = 0 : i64, tpu.core_type = #tpu.core_type<tc>, window_params = [{transform_indices = @transform_0, window_bounds = array<i64: 3, 8, 16>}, {pipeline_mode = #tpu.pipeline_mode<synchronous>, transform_indices = @transform_1, window_bounds = array<i64: 144, 32>}, {pipeline_mode = #tpu.pipeline_mode<synchronous>, transform_indices = @transform_2, window_bounds = array<i64: 3, 32>}, {transform_indices = @transform_3, window_bounds = array<i64: 8, 9>}]} {
    %c0 = arith.constant 0 : index
    %c0_0 = arith.constant 0 : index
    %0 = vector.load %arg2[%c0, %c0_0] : memref<144x32xf32, #tpu.memory_space<vmem>>, vector<16x32xf32>
    %c112 = arith.constant 112 : index
    %c0_1 = arith.constant 0 : index
    %1 = vector.load %arg2[%c112, %c0_1] : memref<144x32xf32, #tpu.memory_space<vmem>>, vector<32x5xf32>
    %c0_2 = arith.constant 0 : index
    %c0_3 = arith.constant 0 : index
    %2 = vector.load %arg3[%c0_2, %c0_3] : memref<3x32xf32, #tpu.memory_space<vmem>>, vector<1x32xf32>
    %c1 = arith.constant 1 : index
    %c0_4 = arith.constant 0 : index
    %3 = vector.load %arg3[%c1, %c0_4] : memref<3x32xf32, #tpu.memory_space<vmem>>, vector<1x32xf32>
    %c2 = arith.constant 2 : index
    %c0_5 = arith.constant 0 : index
    %4 = vector.load %arg3[%c2, %c0_5] : memref<3x32xf32, #tpu.memory_space<vmem>>, vector<1x5xf32>
    %c0_6 = arith.constant 0 : index
    %c0_7 = arith.constant 0 : index
    %c0_8 = arith.constant 0 : index
    %5 = vector.load %arg1[%c0_6, %c0_7, %c0_8] : memref<3x8x16xf32, #tpu.memory_space<vmem>>, vector<1x8x16xf32>
    %6 = vector.shape_cast %5 : vector<1x8x16xf32> to vector<8x16xf32>
    %c1_9 = arith.constant 1 : index
    %c0_10 = arith.constant 0 : index
    %c0_11 = arith.constant 0 : index
    %7 = vector.load %arg1[%c1_9, %c0_10, %c0_11] : memref<3x8x16xf32, #tpu.memory_space<vmem>>, vector<1x8x16xf32>
    %8 = vector.shape_cast %7 : vector<1x8x16xf32> to vector<8x16xf32>
    %c2_12 = arith.constant 2 : index
    %c0_13 = arith.constant 0 : index
    %c0_14 = arith.constant 0 : index
    %9 = vector.load %arg1[%c2_12, %c0_13, %c0_14] : memref<3x8x16xf32, #tpu.memory_space<vmem>>, vector<1x8x16xf32>
    %10 = vector.shape_cast %9 : vector<1x8x16xf32> to vector<8x16xf32>
    %11 = tpu.concatenate %6, %8, %10 in 0 : vector<8x16xf32>, vector<8x16xf32>, vector<8x16xf32> -> vector<24x16xf32>
    %cst = arith.constant dense<0.000000e+00> : vector<24x32xf32>
    %12 = tpu.matmul %11, %0, %cst {dimension_numbers = #tpu.dot_dimension_numbers<[1], [0], [0], [1], [0, 0, 1, 1], [], []>} : vector<24x16xf32>, vector<16x32xf32>, vector<24x32xf32> -> vector<24x32xf32>
    %13 = vector.broadcast %2 : vector<1x32xf32> to vector<24x32xf32>
    %14 = arith.addf %12, %13 : vector<24x32xf32>
    %cst_15 = arith.constant 0.000000e+00 : f32
    %15 = vector.broadcast %cst_15 : f32 to vector<24x32xf32>
    %16 = arith.maximumf %14, %15 : vector<24x32xf32>
    %cst_16 = arith.constant 0.000000e+00 : f32
    %17 = vector.broadcast %cst_16 : f32 to vector<8x32xf32>
    %18 = vector.extract_strided_slice %16 {offsets = [0, 0], sizes = [8, 32], strides = [1, 1]} : vector<24x32xf32> to vector<8x32xf32>
    %c16 = arith.constant 16 : index
    %c0_17 = arith.constant 0 : index
    %19 = vector.load %arg2[%c16, %c0_17] : memref<144x32xf32, #tpu.memory_space<vmem>>, vector<32x32xf32>
    %cst_18 = arith.constant dense<0.000000e+00> : vector<8x32xf32>
    %20 = tpu.matmul %18, %19, %cst_18 {dimension_numbers = #tpu.dot_dimension_numbers<[1], [0], [0], [1], [0, 0, 1, 1], [], []>} : vector<8x32xf32>, vector<32x32xf32>, vector<8x32xf32> -> vector<8x32xf32>
    %21 = arith.addf %17, %20 : vector<8x32xf32>
    %22 = vector.extract_strided_slice %16 {offsets = [8, 0], sizes = [8, 32], strides = [1, 1]} : vector<24x32xf32> to vector<8x32xf32>
    %c48 = arith.constant 48 : index
    %c0_19 = arith.constant 0 : index
    %23 = vector.load %arg2[%c48, %c0_19] : memref<144x32xf32, #tpu.memory_space<vmem>>, vector<32x32xf32>
    %cst_20 = arith.constant dense<0.000000e+00> : vector<8x32xf32>
    %24 = tpu.matmul %22, %23, %cst_20 {dimension_numbers = #tpu.dot_dimension_numbers<[1], [0], [0], [1], [0, 0, 1, 1], [], []>} : vector<8x32xf32>, vector<32x32xf32>, vector<8x32xf32> -> vector<8x32xf32>
    %25 = arith.addf %21, %24 : vector<8x32xf32>
    %26 = vector.extract_strided_slice %16 {offsets = [16, 0], sizes = [8, 32], strides = [1, 1]} : vector<24x32xf32> to vector<8x32xf32>
    %c80 = arith.constant 80 : index
    %c0_21 = arith.constant 0 : index
    %27 = vector.load %arg2[%c80, %c0_21] : memref<144x32xf32, #tpu.memory_space<vmem>>, vector<32x32xf32>
    %cst_22 = arith.constant dense<0.000000e+00> : vector<8x32xf32>
    %28 = tpu.matmul %26, %27, %cst_22 {dimension_numbers = #tpu.dot_dimension_numbers<[1], [0], [0], [1], [0, 0, 1, 1], [], []>} : vector<8x32xf32>, vector<32x32xf32>, vector<8x32xf32> -> vector<8x32xf32>
    %29 = arith.addf %25, %28 : vector<8x32xf32>
    %30 = vector.broadcast %3 : vector<1x32xf32> to vector<8x32xf32>
    %31 = arith.addf %29, %30 : vector<8x32xf32>
    %cst_23 = arith.constant 0.000000e+00 : f32
    %32 = vector.broadcast %cst_23 : f32 to vector<8x32xf32>
    %33 = arith.maximumf %31, %32 : vector<8x32xf32>
    %cst_24 = arith.constant dense<0.000000e+00> : vector<8x5xf32>
    %34 = tpu.matmul %33, %1, %cst_24 {dimension_numbers = #tpu.dot_dimension_numbers<[1], [0], [0], [1], [0, 0, 1, 1], [], []>} : vector<8x32xf32>, vector<32x5xf32>, vector<8x5xf32> -> vector<8x5xf32>
    %35 = vector.broadcast %4 : vector<1x5xf32> to vector<8x5xf32>
    %36 = arith.addf %34, %35 : vector<8x5xf32>
    %37 = vector.extract_strided_slice %36 {offsets = [0, 0], sizes = [8, 1], strides = [1, 1]} : vector<8x5xf32> to vector<8x1xf32>
    %38 = vector.extract_strided_slice %36 {offsets = [0, 1], sizes = [8, 4], strides = [1, 1]} : vector<8x5xf32> to vector<8x4xf32>
    %cst_25 = arith.constant dense<0xFF800000> : vector<8xf32>
    %39 = vector.multi_reduction <maximumf>, %38, %cst_25 [1] : vector<8x4xf32> to vector<8xf32>
    %40 = vector.shape_cast %39 : vector<8xf32> to vector<8x1xf32>
    %41 = vector.broadcast %40 : vector<8x1xf32> to vector<8x4xf32>
    %42 = arith.subf %38, %41 : vector<8x4xf32>
    %43 = math.exp %42 : vector<8x4xf32>
    %cst_26 = arith.constant dense<0.000000e+00> : vector<8xf32>
    %44 = vector.multi_reduction <add>, %43, %cst_26 [1] : vector<8x4xf32> to vector<8xf32>
    %45 = vector.shape_cast %44 : vector<8xf32> to vector<8x1xf32>
    %46 = math.log %45 : vector<8x1xf32>
    %47 = vector.broadcast %46 : vector<8x1xf32> to vector<8x4xf32>
    %48 = arith.subf %42, %47 : vector<8x4xf32>
    %49 = tpu.concatenate %37, %38, %48 in 1 : vector<8x1xf32>, vector<8x4xf32>, vector<8x4xf32> -> vector<8x9xf32>
    %c0_27 = arith.constant 0 : index
    %c0_28 = arith.constant 0 : index
    %50 = vector.load %arg4[%c0_27, %c0_28] : memref<8x9xf32, #tpu.memory_space<vmem>>, vector<8x9xf32>
    tpu.vector_store %arg4[%c0_27, %c0_28], %49 {strides = array<i32>} : memref<8x9xf32, #tpu.memory_space<vmem>>, vector<8x9xf32>,
    return
  }
  func.func @transform_0(%arg0: i32) -> (i32, i32, i32) {
    %c0_i32 = arith.constant 0 : i32
    %c0_i32_0 = arith.constant 0 : i32
    %c0_i32_1 = arith.constant 0 : i32
    return %c0_i32, %arg0, %c0_i32_0 : i32, i32, i32
  }
  func.func @transform_1(%arg0: i32) -> (i32, i32) {
    %c0_i32 = arith.constant 0 : i32
    %c0_i32_0 = arith.constant 0 : i32
    %c0_i32_1 = arith.constant 0 : i32
    return %c0_i32, %c0_i32_0 : i32, i32
  }
  func.func @transform_2(%arg0: i32) -> (i32, i32) {
    %c0_i32 = arith.constant 0 : i32
    %c0_i32_0 = arith.constant 0 : i32
    %c0_i32_1 = arith.constant 0 : i32
    return %c0_i32, %c0_i32_0 : i32, i32
  }
  func.func @transform_3(%arg0: i32) -> (i32, i32) {
    %c0_i32 = arith.constant 0 : i32
    %c0_i32_0 = arith.constant 0 : i32
    return %arg0, %c0_i32 : i32, i32
  }
}

</mosaic_0001>

<llo_original>
// kernel: tpu_custom_call.1
$region0: #{tpu_custom_call.1}
  #allocation0 [shape = 'u32[]', space=smem, size = 0x4, offset = 0x4, fixed_abs, tag = 'smem constant byte address 0x4 - core index']
  #allocation1 [shape = 'u32[144,128]{1,0:T(1,128)}', space=vmem, size = 0x12000, scoped, tag = 'internal scratch']
  %s0 = inlined_call_operand.vmem [shape: f32[3,8,16], index: 0, kind: input, shape index: {}]
  %s1 = inlined_call_operand.vmem [shape: f32[144,32], index: 1, kind: input, shape index: {}]
  %s2 = inlined_call_operand.vmem [shape: f32[3,32], index: 2, kind: input, shape index: {}]
  %s3 = inlined_call_operand.hbm [shape: f32[8,9], index: 3, kind: output, shape index: {}]
  %s4 = sld [smem:[#allocation0]]
  $region22: #{tpu_custom_call.1} parent=0
    _
  %s6 = ssub.s32 1, %s4
  %s7 = scalar_select 0, %s6, %s4
  $region1: #{tpu_custom_call.1} parent=0
    #allocation2 [shape = 'u8[4096]{0}', space=vmem, size = 0x1000, scoped, tag = 'output window, operand 0, single buffered']
    #allocation3 [shape = 's32[1]{0}', space=sflag, size = 0x4, scoped, tag = 'scoped memory for tpu_custom_call.1']
    %8 = vsyncpa [#allocation3], 0
    // Predicated region
    $region2: #{tpu_custom_call.1} parent=1 // pred_check
      _
    $region3: #{tpu_custom_call.1} parent=1 // pred_check_branch
      %10 = sbr.rel (0) target = $region5
    $region4: #{tpu_custom_call.1} parent=1 // pred_region
      _
    $region5: #{tpu_custom_call.1} parent=1 // pred_fallthru
      _
    // Predicated region
    $region6: #{tpu_custom_call.1} parent=1 // pred_check
      _
    $region7: #{tpu_custom_call.1} parent=1 // pred_check_branch
      %12 = sbr.rel (0) target = $region9
    $region8: #{tpu_custom_call.1} parent=1 // pred_region
      _
    $region9: #{tpu_custom_call.1} parent=1 // pred_fallthru
      _
    // Predicated region
    $region10: #{tpu_custom_call.1} parent=1 // pred_check
      _
    $region11: #{tpu_custom_call.1} parent=1 // pred_check_branch
      %14 = sbr.rel (0) target = $region13
    $region12: #{tpu_custom_call.1} parent=1 // pred_region
      _
    $region13: #{tpu_custom_call.1} parent=1 // pred_fallthru
      _
    %v15 = vld [vmem:[%s1] sm:$0xff]
    %v16 = vld [vmem:[%s1 + $0x8] sm:$0xff]
    %v17 = vld [vmem:[%s1 + $0x70] sm:$0xff]
    %v18 = vld [vmem:[%s1 + $0x78] sm:$0xff]
    %v19 = vld [vmem:[%s1 + $0x80] sm:$0xff]
    %v20 = vld [vmem:[%s1 + $0x88] sm:$0xff]
    %v21 = vld [vmem:[%s2] sm:$0x1]
    %v22 = vld [vmem:[%s2 + $0x1] sm:$0x1]
    %v23 = vld [vmem:[%s2 + $0x2] sm:$0x1]
    %v24 = vld [vmem:[%s0] sm:$0xff]
    %s25 = scalar_lea.vmem %s0, 8
    %v26 = vld [vmem:[%s25] sm:$0xff]
    %s27 = scalar_lea.vmem %s0, 16
    %v28 = vld [vmem:[%s27] sm:$0xff]
    %v29 = vlaneseq
    %v30 = vshrl.u32 %v29, 7
    %v31 = vsub.s32 0, %v30
    %v32 = vrot.slane %v21, %v31
    %vm33 = vcmask 130048
    %v35 = vsel %vm33, %v24, 0
    %v38 = vsel %vm33, %v26, 0
    %v41 = vsel %vm33, %v28, 0
    %43 = vmatprep.subr.mxu0 0.0
    %44 = vmatpush1.msra.mxu0 %v15
    %45 = vmatprep.subr.mxu0 0.0
    %46 = vmatpush1.msra.mxu0 %v16
    %47 = vmatprep.subr.mxu0 0.0
    %48 = vmatpush1.msra.mxu0 0.0
    %49 = vmatprep.subr.mxu0 0.0
    %50 = vmatpush1.msra.mxu0 0.0
    %51 = vmatprep.subr.mxu0 0.0
    %52 = vmatpush1.msra.mxu0 0.0
    %53 = vmatprep.subr.mxu0 0.0
    %54 = vmatpush1.msra.mxu0 0.0
    %55 = vmatprep.subr.mxu0 0.0
    %56 = vmatpush1.msra.mxu0 0.0
    %57 = vmatprep.subr.mxu0 0.0
    %58 = vmatpush1.msra.mxu0 0.0
    %59 = vmatprep.subr.mxu0 0.0
    %60 = vmatpush1.msra.mxu0 0.0
    %61 = vmatprep.subr.mxu0 0.0
    %62 = vmatpush1.msra.mxu0 0.0
    %63 = vmatprep.subr.mxu0 0.0
    %64 = vmatpush1.msra.mxu0 0.0
    %65 = vmatprep.subr.mxu0 0.0
    %66 = vmatpush1.msra.mxu0 0.0
    %67 = vmatprep.subr.mxu0 0.0
    %68 = vmatpush1.msra.mxu0 0.0
    %69 = vmatprep.subr.mxu0 0.0
    %70 = vmatpush1.msra.mxu0 0.0
    %71 = vmatprep.subr.mxu0 0.0
    %72 = vmatpush1.msra.mxu0 0.0
    %73 = vmatprep.subr.mxu0 0.0
    %74 = vmatpush1.msra.mxu0 0.0
    %75 = vmatprep.subr.mxu0 0.0
    %76 = vmatpush1.msra.mxu0 0.0
    %77 = vmatprep.subr.mxu0 0.0
    %78 = vmatpush1.msra.mxu0 0.0
    %79 = vmatprep.subr.mxu0 0.0
    %80 = vmatpush1.msra.mxu0 0.0
    %81 = vmatprep.subr.mxu0 0.0
    %82 = vmatpush1.msra.mxu0 0.0
    %83 = vmatprep.subr.mxu0 0.0
    %84 = vmatpush1.msra.mxu0 0.0
    %85 = vmatprep.subr.mxu0 0.0
    %86 = vmatpush1.msra.mxu0 0.0
    %87 = vmatprep.subr.mxu0 0.0
    %88 = vmatpush1.msra.mxu0 0.0
    %89 = vmatprep.subr.mxu0 0.0
    %90 = vmatpush1.msra.mxu0 0.0
    %91 = vmatprep.subr.mxu0 0.0
    %92 = vmatpush1.msra.mxu0 0.0
    %93 = vmatprep.subr.mxu0 0.0
    %94 = vmatpush1.msra.mxu0 0.0
    %95 = vmatprep.subr.mxu0 0.0
    %96 = vmatpush1.msra.mxu0 0.0
    %97 = vmatprep.subr.mxu0 0.0
    %98 = vmatpush1.msra.mxu0 0.0
    %99 = vmatprep.subr.mxu0 0.0
    %100 = vmatpush1.msra.mxu0 0.0
    %101 = vmatprep.subr.mxu0 0.0
    %102 = vmatpush1.msra.mxu0 0.0
    %103 = vmatprep.subr.mxu0 0.0
    %104 = vmatpush1.msra.mxu0 0.0
    %105 = vmatprep.subr.mxu0 0.0
    %106 = vmatpush1.msra.mxu0 0.0
    %107 = vmatprep.mubr.f32.mxu0 0.0
    %108 = vmatmul.mubr.f32.gmra.mrb[0].mxu0 %v35
    %v109 = vpop.f32.mrb[0].mxu0
    %v110 = vadd.f32 %v32, %v109
    %v111 = vpop.f32.mrb[0].mxu0
    %112 = vmatprep.mubr.f32.mxu0 0.0
    %113 = vmatmul.mubr.f32.gmra.mrb[0].mxu0 %v38
    %v114 = vpop.f32.mrb[0].mxu0
    %v115 = vadd.f32 %v32, %v114
    %v116 = vpop.f32.mrb[0].mxu0
    %117 = vmatprep.mubr.f32.mxu0 0.0
    %118 = vmatmul.mubr.f32.gmra.mrb[0].mxu0 %v41
    %v119 = vpop.f32.mrb[0].mxu0
    %v120 = vadd.f32 %v32, %v119
    %v121 = vpop.f32.mrb[0].mxu0
    %122 = vdwg.mxu0
    %v123 = vmax.f32 %v110, 0.0
    %v124 = vmax.f32 %v115, 0.0
    %v125 = vmax.f32 %v120, 0.0
    %v126 = vld [vmem:[%s1 + $0x10] sm:$0xff]
    %v127 = vld [vmem:[%s1 + $0x18] sm:$0xff]
    %v128 = vld [vmem:[%s1 + $0x20] sm:$0xff]
    %v129 = vld [vmem:[%s1 + $0x28] sm:$0xff]
    %v130 = vld [vmem:[%s1 + $0x30] sm:$0xff]
    %v131 = vld [vmem:[%s1 + $0x38] sm:$0xff]
    %v132 = vld [vmem:[%s1 + $0x40] sm:$0xff]
    %v133 = vld [vmem:[%s1 + $0x48] sm:$0xff]
    %vm134 = vcmask 261120
    %v136 = vsel %vm134, %v124, 0
    %138 = vmatprep.subr.mxu0 0.0
    %139 = vmatpush1.msra.mxu0 %v130
    %140 = vmatprep.subr.mxu0 0.0
    %141 = vmatpush1.msra.mxu0 %v131
    %142 = vmatprep.subr.mxu0 0.0
    %143 = vmatpush1.msra.mxu0 %v132
    %144 = vmatprep.subr.mxu0 0.0
    %145 = vmatpush1.msra.mxu0 %v133
    %146 = vmatprep.subr.mxu0 0.0
    %147 = vmatpush1.msra.mxu0 0.0
    %148 = vmatprep.subr.mxu0 0.0
    %149 = vmatpush1.msra.mxu0 0.0
    %150 = vmatprep.subr.mxu0 0.0
    %151 = vmatpush1.msra.mxu0 0.0
    %152 = vmatprep.subr.mxu0 0.0
    %153 = vmatpush1.msra.mxu0 0.0
    %154 = vmatprep.subr.mxu0 0.0
    %155 = vmatpush1.msra.mxu0 0.0
    %156 = vmatprep.subr.mxu0 0.0
    %157 = vmatpush1.msra.mxu0 0.0
    %158 = vmatprep.subr.mxu0 0.0
    %159 = vmatpush1.msra.mxu0 0.0
    %160 = vmatprep.subr.mxu0 0.0
    %161 = vmatpush1.msra.mxu0 0.0
    %162 = vmatprep.subr.mxu0 0.0
    %163 = vmatpush1.msra.mxu0 0.0
    %164 = vmatprep.subr.mxu0 0.0
    %165 = vmatpush1.msra.mxu0 0.0
    %166 = vmatprep.subr.mxu0 0.0
    %167 = vmatpush1.msra.mxu0 0.0
    %168 = vmatprep.subr.mxu0 0.0
    %169 = vmatpush1.msra.mxu0 0.0
    %170 = vmatprep.subr.mxu0 0.0
    %171 = vmatpush1.msra.mxu0 0.0
    %172 = vmatprep.subr.mxu0 0.0
    %173 = vmatpush1.msra.mxu0 0.0
    %174 = vmatprep.subr.mxu0 0.0
    %175 = vmatpush1.msra.mxu0 0.0
    %176 = vmatprep.subr.mxu0 0.0
    %177 = vmatpush1.msra.mxu0 0.0
    %178 = vmatprep.subr.mxu0 0.0
    %179 = vmatpush1.msra.mxu0 0.0
    %180 = vmatprep.subr.mxu0 0.0
    %181 = vmatpush1.msra.mxu0 0.0
    %182 = vmatprep.subr.mxu0 0.0
    %183 = vmatpush1.msra.mxu0 0.0
    %184 = vmatprep.subr.mxu0 0.0
    %185 = vmatpush1.msra.mxu0 0.0
    %186 = vmatprep.subr.mxu0 0.0
    %187 = vmatpush1.msra.mxu0 0.0
    %188 = vmatprep.subr.mxu0 0.0
    %189 = vmatpush1.msra.mxu0 0.0
    %190 = vmatprep.subr.mxu0 0.0
    %191 = vmatpush1.msra.mxu0 0.0
    %192 = vmatprep.subr.mxu0 0.0
    %193 = vmatpush1.msra.mxu0 0.0
    %194 = vmatprep.subr.mxu0 0.0
    %195 = vmatpush1.msra.mxu0 0.0
    %196 = vmatprep.subr.mxu0 0.0
    %197 = vmatpush1.msra.mxu0 0.0
    %198 = vmatprep.subr.mxu0 0.0
    %199 = vmatpush1.msra.mxu0 0.0
    %200 = vmatprep.subr.mxu0 0.0
    %201 = vmatpush1.msra.mxu0 0.0
    %202 = vmatprep.mubr.f32.mxu0 0.0
    %203 = vmatmul.mubr.f32.gmra.mrb[0].mxu0 %v136
    %v204 = vpop.f32.mrb[0].mxu0
    %v205 = vadd.f32 0.0, %v204
    %v206 = vpop.f32.mrb[0].mxu0
    %207 = vdwg.mxu0
    %v209 = vsel %vm134, %v123, 0
    %211 = vmatprep.subr.mxu0 0.0
    %212 = vmatpush1.msra.mxu0 %v126
    %213 = vmatprep.subr.mxu0 0.0
    %214 = vmatpush1.msra.mxu0 %v127
    %215 = vmatprep.subr.mxu0 0.0
    %216 = vmatpush1.msra.mxu0 %v128
    %217 = vmatprep.subr.mxu0 0.0
    %218 = vmatpush1.msra.mxu0 %v129
    %219 = vmatprep.subr.mxu0 0.0
    %220 = vmatpush1.msra.mxu0 0.0
    %221 = vmatprep.subr.mxu0 0.0
    %222 = vmatpush1.msra.mxu0 0.0
    %223 = vmatprep.subr.mxu0 0.0
    %224 = vmatpush1.msra.mxu0 0.0
    %225 = vmatprep.subr.mxu0 0.0
    %226 = vmatpush1.msra.mxu0 0.0
    %227 = vmatprep.subr.mxu0 0.0
    %228 = vmatpush1.msra.mxu0 0.0
    %229 = vmatprep.subr.mxu0 0.0
    %230 = vmatpush1.msra.mxu0 0.0
    %231 = vmatprep.subr.mxu0 0.0
    %232 = vmatpush1.msra.mxu0 0.0
    %233 = vmatprep.subr.mxu0 0.0
    %234 = vmatpush1.msra.mxu0 0.0
    %235 = vmatprep.subr.mxu0 0.0
    %236 = vmatpush1.msra.mxu0 0.0
    %237 = vmatprep.subr.mxu0 0.0
    %238 = vmatpush1.msra.mxu0 0.0
    %239 = vmatprep.subr.mxu0 0.0
    %240 = vmatpush1.msra.mxu0 0.0
    %241 = vmatprep.subr.mxu0 0.0
    %242 = vmatpush1.msra.mxu0 0.0
    %243 = vmatprep.subr.mxu0 0.0
    %244 = vmatpush1.msra.mxu0 0.0
    %245 = vmatprep.subr.mxu0 0.0
    %246 = vmatpush1.msra.mxu0 0.0
    %247 = vmatprep.subr.mxu0 0.0
    %248 = vmatpush1.msra.mxu0 0.0
    %249 = vmatprep.subr.mxu0 0.0
    %250 = vmatpush1.msra.mxu0 0.0
    %251 = vmatprep.subr.mxu0 0.0
    %252 = vmatpush1.msra.mxu0 0.0
    %253 = vmatprep.subr.mxu0 0.0
    %254 = vmatpush1.msra.mxu0 0.0
    %255 = vmatprep.subr.mxu0 0.0
    %256 = vmatpush1.msra.mxu0 0.0
    %257 = vmatprep.subr.mxu0 0.0
    %258 = vmatpush1.msra.mxu0 0.0
    %259 = vmatprep.subr.mxu0 0.0
    %260 = vmatpush1.msra.mxu0 0.0
    %261 = vmatprep.subr.mxu0 0.0
    %262 = vmatpush1.msra.mxu0 0.0
    %263 = vmatprep.subr.mxu0 0.0
    %264 = vmatpush1.msra.mxu0 0.0
    %265 = vmatprep.subr.mxu0 0.0
    %266 = vmatpush1.msra.mxu0 0.0
    %267 = vmatprep.subr.mxu0 0.0
    %268 = vmatpush1.msra.mxu0 0.0
    %269 = vmatprep.subr.mxu0 0.0
    %270 = vmatpush1.msra.mxu0 0.0
    %271 = vmatprep.subr.mxu0 0.0
    %272 = vmatpush1.msra.mxu0 0.0
    %273 = vmatprep.subr.mxu0 0.0
    %274 = vmatpush1.msra.mxu0 0.0
    %275 = vmatprep.mubr.f32.mxu0 0.0
    %276 = vmatmul.mubr.f32.gmra.mrb[0].mxu0 %v209
    %v277 = vpop.f32.mrb[0].mxu0
    %v278 = vadd.f32 %v205, %v277
    %v279 = vpop.f32.mrb[0].mxu0
    %280 = vdwg.mxu0
    %v281 = vld [vmem:[%s1 + $0x50] sm:$0xff]
    %v282 = vld [vmem:[%s1 + $0x58] sm:$0xff]
    %v283 = vld [vmem:[%s1 + $0x60] sm:$0xff]
    %v284 = vld [vmem:[%s1 + $0x68] sm:$0xff]
    %v286 = vsel %vm134, %v125, 0
    %288 = vmatprep.subr.mxu0 0.0
    %289 = vmatpush1.msra.mxu0 %v281
    %290 = vmatprep.subr.mxu0 0.0
    %291 = vmatpush1.msra.mxu0 %v282
    %292 = vmatprep.subr.mxu0 0.0
    %293 = vmatpush1.msra.mxu0 %v283
    %294 = vmatprep.subr.mxu0 0.0
    %295 = vmatpush1.msra.mxu0 %v284
    %296 = vmatprep.subr.mxu0 0.0
    %297 = vmatpush1.msra.mxu0 0.0
    %298 = vmatprep.subr.mxu0 0.0
    %299 = vmatpush1.msra.mxu0 0.0
    %300 = vmatprep.subr.mxu0 0.0
    %301 = vmatpush1.msra.mxu0 0.0
    %302 = vmatprep.subr.mxu0 0.0
    %303 = vmatpush1.msra.mxu0 0.0
    %304 = vmatprep.subr.mxu0 0.0
    %305 = vmatpush1.msra.mxu0 0.0
    %306 = vmatprep.subr.mxu0 0.0
    %307 = vmatpush1.msra.mxu0 0.0
    %308 = vmatprep.subr.mxu0 0.0
    %309 = vmatpush1.msra.mxu0 0.0
    %310 = vmatprep.subr.mxu0 0.0
    %311 = vmatpush1.msra.mxu0 0.0
    %312 = vmatprep.subr.mxu0 0.0
    %313 = vmatpush1.msra.mxu0 0.0
    %314 = vmatprep.subr.mxu0 0.0
    %315 = vmatpush1.msra.mxu0 0.0
    %316 = vmatprep.subr.mxu0 0.0
    %317 = vmatpush1.msra.mxu0 0.0
    %318 = vmatprep.subr.mxu0 0.0
    %319 = vmatpush1.msra.mxu0 0.0
    %320 = vmatprep.subr.mxu0 0.0
    %321 = vmatpush1.msra.mxu0 0.0
    %322 = vmatprep.subr.mxu0 0.0
    %323 = vmatpush1.msra.mxu0 0.0
    %324 = vmatprep.subr.mxu0 0.0
    %325 = vmatpush1.msra.mxu0 0.0
    %326 = vmatprep.subr.mxu0 0.0
    %327 = vmatpush1.msra.mxu0 0.0
    %328 = vmatprep.subr.mxu0 0.0
    %329 = vmatpush1.msra.mxu0 0.0
    %330 = vmatprep.subr.mxu0 0.0
    %331 = vmatpush1.msra.mxu0 0.0
    %332 = vmatprep.subr.mxu0 0.0
    %333 = vmatpush1.msra.mxu0 0.0
    %334 = vmatprep.subr.mxu0 0.0
    %335 = vmatpush1.msra.mxu0 0.0
    %336 = vmatprep.subr.mxu0 0.0
    %337 = vmatpush1.msra.mxu0 0.0
    %338 = vmatprep.subr.mxu0 0.0
    %339 = vmatpush1.msra.mxu0 0.0
    %340 = vmatprep.subr.mxu0 0.0
    %341 = vmatpush1.msra.mxu0 0.0
    %342 = vmatprep.subr.mxu0 0.0
    %343 = vmatpush1.msra.mxu0 0.0
    %344 = vmatprep.subr.mxu0 0.0
    %345 = vmatpush1.msra.mxu0 0.0
    %346 = vmatprep.subr.mxu0 0.0
    %347 = vmatpush1.msra.mxu0 0.0
    %348 = vmatprep.subr.mxu0 0.0
    %349 = vmatpush1.msra.mxu0 0.0
    %350 = vmatprep.subr.mxu0 0.0
    %351 = vmatpush1.msra.mxu0 0.0
    %352 = vmatprep.mubr.f32.mxu0 0.0
    %353 = vmatmul.mubr.f32.gmra.mrb[0].mxu0 %v286
    %v354 = vpop.f32.mrb[0].mxu0
    %v355 = vadd.f32 0.0, %v354
    %v356 = vpop.f32.mrb[0].mxu0
    %357 = vdwg.mxu0
    %v358 = vadd.f32 %v278, %v355
    %v359 = vlaneseq
    %v360 = vshrl.u32 %v359, 7
    %v361 = vsub.s32 0, %v360
    %v362 = vrot.slane %v22, %v361
    %v363 = vadd.f32 %v358, %v362
    %v364 = vmax.f32 %v363, 0.0
    %v365 = vlaneseq
    %v366 = vshrl.u32 %v365, 7
    %v367 = vsub.s32 0, %v366
    %v368 = vrot.slane %v23, %v367
    %v370 = vsel %vm134, %v364, 0
    %372 = vmatprep.subr.mxu0 0.0
    %373 = vmatpush1.msra.mxu0 %v17
    %374 = vmatprep.subr.mxu0 0.0
    %375 = vmatpush1.msra.mxu0 %v18
    %376 = vmatprep.subr.mxu0 0.0
    %377 = vmatpush1.msra.mxu0 %v19
    %378 = vmatprep.subr.mxu0 0.0
    %379 = vmatpush1.msra.mxu0 %v20
    %380 = vmatprep.subr.mxu0 0.0
    %381 = vmatpush1.msra.mxu0 0.0
    %382 = vmatprep.subr.mxu0 0.0
    %383 = vmatpush1.msra.mxu0 0.0
    %384 = vmatprep.subr.mxu0 0.0
    %385 = vmatpush1.msra.mxu0 0.0
    %386 = vmatprep.subr.mxu0 0.0
    %387 = vmatpush1.msra.mxu0 0.0
    %388 = vmatprep.subr.mxu0 0.0
    %389 = vmatpush1.msra.mxu0 0.0
    %390 = vmatprep.subr.mxu0 0.0
    %391 = vmatpush1.msra.mxu0 0.0
    %392 = vmatprep.subr.mxu0 0.0
    %393 = vmatpush1.msra.mxu0 0.0
    %394 = vmatprep.subr.mxu0 0.0
    %395 = vmatpush1.msra.mxu0 0.0
    %396 = vmatprep.subr.mxu0 0.0
    %397 = vmatpush1.msra.mxu0 0.0
    %398 = vmatprep.subr.mxu0 0.0
    %399 = vmatpush1.msra.mxu0 0.0
    %400 = vmatprep.subr.mxu0 0.0
    %401 = vmatpush1.msra.mxu0 0.0
    %402 = vmatprep.subr.mxu0 0.0
    %403 = vmatpush1.msra.mxu0 0.0
    %404 = vmatprep.subr.mxu0 0.0
    %405 = vmatpush1.msra.mxu0 0.0
    %406 = vmatprep.subr.mxu0 0.0
    %407 = vmatpush1.msra.mxu0 0.0
    %408 = vmatprep.subr.mxu0 0.0
    %409 = vmatpush1.msra.mxu0 0.0
    %410 = vmatprep.subr.mxu0 0.0
    %411 = vmatpush1.msra.mxu0 0.0
    %412 = vmatprep.subr.mxu0 0.0
    %413 = vmatpush1.msra.mxu0 0.0
    %414 = vmatprep.subr.mxu0 0.0
    %415 = vmatpush1.msra.mxu0 0.0
    %416 = vmatprep.subr.mxu0 0.0
    %417 = vmatpush1.msra.mxu0 0.0
    %418 = vmatprep.subr.mxu0 0.0
    %419 = vmatpush1.msra.mxu0 0.0
    %420 = vmatprep.subr.mxu0 0.0
    %421 = vmatpush1.msra.mxu0 0.0
    %422 = vmatprep.subr.mxu0 0.0
    %423 = vmatpush1.msra.mxu0 0.0
    %424 = vmatprep.subr.mxu0 0.0
    %425 = vmatpush1.msra.mxu0 0.0
    %426 = vmatprep.subr.mxu0 0.0
    %427 = vmatpush1.msra.mxu0 0.0
    %428 = vmatprep.subr.mxu0 0.0
    %429 = vmatpush1.msra.mxu0 0.0
    %430 = vmatprep.subr.mxu0 0.0
    %431 = vmatpush1.msra.mxu0 0.0
    %432 = vmatprep.subr.mxu0 0.0
    %433 = vmatpush1.msra.mxu0 0.0
    %434 = vmatprep.subr.mxu0 0.0
    %435 = vmatpush1.msra.mxu0 0.0
    %436 = vmatprep.mubr.f32.mxu0 0.0
    %437 = vmatmul.mubr.f32.gmra.mrb[0].mxu0 %v370
    %v438 = vpop.f32.mrb[0].mxu0
    %v439 = vadd.f32 %v368, %v438
    %v440 = vpop.f32.mrb[0].mxu0
    %441 = vdwg.mxu0
    %vm442 = vcmask 39944
    %v443 = vsel %vm442, %v439, -inf
    %444 = vmax.xlane.f32.xlu0 %v443
    %v445 = vpop.xlane.xlu0 %444
    %v446 = vsub.f32 %v439, %v445
    %v447 = vmul.f32 %v446, 1.442695
    %v448 = vpow.pop %v447
    %450 = vrot.lane.b32.xlu0 %v448, 127
    %v451 = vpop.permute.xlu0 %450
    %vm453 = vcmask 31744
    %v454 = vsel %vm453, %v451, 0.0
    %455 = vadd.xlane.f32.xlu0 %v454
    %v456 = vpop.xlane.xlu0 %455
    %v457 = vlog2.pop %v456
    %v458 = vmul.f32 %v457, 0.6931472
    %v459 = vsub.f32 %v446, %v458
    %461 = vrot.lane.b32.xlu0 %v459, 4
    %v462 = vpop.permute.xlu0 %461
    %vm464 = vcmask 39936
    %v465 = vsel %vm464, %v439, %v462
    %vm466 = vcmask 72704
    %467 = vst.msk [vmem:[#allocation2] sm:$0xff] %vm466, %v465
    // Predicated region
    $region14: #{tpu_custom_call.1} parent=1 // pred_check
      _
    $region15: #{tpu_custom_call.1} parent=1 // pred_check_branch
      %469 = sbr.rel (0) target = $region17
    $region16: #{tpu_custom_call.1} parent=1 // pred_region
      %s471 = ssub.s32 128, 128
      %472 = vsyncadd [#allocation3], %s471
      %s474 = sshll.u32 [#allocation2], 4
      %s475 = int_to_ptr.vmem [resolvable:$true] %s474
      %477 = dma.vmem_to_hbm [thread:$0]  %s475, 128, %s3, [#allocation3]
    $region17: #{tpu_custom_call.1} parent=1 // pred_fallthru
      _
    // Predicated region
    $region18: #{tpu_custom_call.1} parent=1 // pred_check
      _
    $region19: #{tpu_custom_call.1} parent=1 // pred_check_branch
      %479 = sbr.rel (0) target = $region21
    $region20: #{tpu_custom_call.1} parent=1 // pred_region
      %480 = dma.done [#allocation3], 128
    $region21: #{tpu_custom_call.1} parent=1 // pred_fallthru
      _
    %481 = vsyncpa [#allocation3], 1

</llo_original>
